<compile_context>
chip_gen: v5e
topology: v5e:2x2
jax: 0.10.0
libtpu: 0.0.40
codegen_flags: <defaults>
</compile_context>

<pallas_src>
import math

import jax
import jax.numpy as jnp
from jax.experimental import pallas as pl
from jax.experimental.pallas import tpu as pltpu

LANES = 128


def _round_up(n: int, m: int) -> int:
    return ((n + m - 1) // m) * m


def mlp_kernel(x_ref, w1_ref, b1_ref, w2_ref, b2_ref, o_ref):
    # x_ref : (TB, D)        input dtype; cast to bf16 here (fused, no extra HBM copy)
    # w1_ref: (D, H_pad)     bf16        b1_ref: (1, H_pad)  f32
    # w2_ref: (H_pad, O_pad) bf16        b2_ref: (1, O_pad)  f32
    # o_ref : (TB, O_pad)    bf16 (lane-dense store, half the writeback bytes)
    x = x_ref[...].astype(jnp.bfloat16)
    h = jnp.dot(x, w1_ref[...], preferred_element_type=jnp.float32) + b1_ref[...]
    h = jnp.maximum(h, 0.0)                                    # ReLU in f32 on the VPU
    o = jnp.dot(h.astype(jnp.bfloat16), w2_ref[...],
                preferred_element_type=jnp.float32) + b2_ref[...]
    o_ref[...] = o.astype(o_ref.dtype)


def make_mnist_forward(w1, b1, w2, b2, *, tb=None, out_dtype=jnp.bfloat16):
    """Build the jitted forward of MNIST_module.

    w1: (D, H), b1: (H,), w2: (H, O), b2: (O,) — i.e. torch weights transposed,
    so the kernel computes x @ W (== x @ W_torch.T).  Parameter padding + bf16
    cast happens ONCE here, not per forward call.
    """
    D, H = w1.shape
    O = w2.shape[1]
    H_pad = _round_up(H, LANES)
    O_pad = _round_up(O, LANES)

    # One-time lane-dense zero-padding (numerically exact: padded W1 columns give
    # zero pre-activation, ReLU(0)=0, padded W2 rows see zero activations, padded
    # output lanes are sliced off).
    w1p = jnp.zeros((D, H_pad), jnp.bfloat16).at[:, :H].set(w1.astype(jnp.bfloat16))
    b1p = jnp.zeros((1, H_pad), jnp.float32).at[:, :H].set(b1.astype(jnp.float32))
    w2p = jnp.zeros((H_pad, O_pad), jnp.bfloat16).at[:H, :O].set(w2.astype(jnp.bfloat16))
    b2p = jnp.zeros((1, O_pad), jnp.float32).at[:, :O].set(b2.astype(jnp.float32))

    device_kind = jax.devices()[0].device_kind.lower()
    is_v7 = "v7" in device_kind
    if tb is None:
        # HBM-bound: big tiles amortize the ~0.35us/step overhead.  v7x drains a
        # tile ~2.3x faster, so it wants more bytes per step.
        tb = 4096 if is_v7 else 2048
    tb = max(16, _round_up(tb, 16))     # multiple of 16 sublanes (bf16 out tile)

    out_itemsize = jnp.dtype(out_dtype).itemsize

    def forward(x_nchw):
        B = x_nchw.shape[0]
        x2 = x_nchw.reshape(B, -1)      # nn.Flatten(): row-major reshape, no copy
        assert x2.shape[1] == D, "flattened input does not match w1 fan-in"

        # Batch tiling without any wrapper-side padding of x:
        #  * whole batch in one tile -> block spans the full batch dim;
        #  * otherwise multiple-of-16 tile, ragged last block handled by Pallas.
        TB = B if B <= tb else tb
        if is_v7 and B >= 32 and pl.cdiv(B, TB) < 2:
            # Keep >=2 grid steps so the "parallel" axis shards across v7x's 2 TCs.
            TB = _round_up(pl.cdiv(B, 2), 16)
        grid = (pl.cdiv(B, TB),)

        flops = 2 * B * (D * H_pad + H_pad * O_pad)
        bytes_accessed = (
            x2.size * x2.dtype.itemsize
            + w1p.size * 2 + w2p.size * 2
            + b1p.size * 4 + b2p.size * 4
            + B * O_pad * out_itemsize
        )

        out = pl.pallas_call(
            mlp_kernel,
            out_shape=jax.ShapeDtypeStruct((B, O_pad), out_dtype),
            grid=grid,
            in_specs=[
                pl.BlockSpec((TB, D), lambda i: (i, 0)),         # x: tiled over batch
                pl.BlockSpec((D, H_pad), lambda i: (0, 0)),      # weights/biases stay
                pl.BlockSpec((1, H_pad), lambda i: (0, 0)),      # VMEM-resident across
                pl.BlockSpec((H_pad, O_pad), lambda i: (0, 0)),  # the whole grid
                pl.BlockSpec((1, O_pad), lambda i: (0, 0)),
            ],
            out_specs=pl.BlockSpec((TB, O_pad), lambda i: (i, 0)),
            compiler_params=pltpu.CompilerParams(
                dimension_semantics=("parallel",),               # shard batch on v7x
            ),
            cost_estimate=pl.CostEstimate(
                flops=int(flops), transcendentals=0,
                bytes_accessed=int(bytes_accessed)),
        )(x2, w1p, b1p, w2p, b2p)

        # Drop the padded output lanes; under jit this fuses with any consumer.
        return out[:, :O]

    return jax.jit(forward)


def init_linear_params(key, fan_in, fan_out):
    """Deterministic init mimicking nn.Linear default (uniform +-1/sqrt(fan_in))."""
    kw, kb = jax.random.split(key)
    bound = 1.0 / math.sqrt(fan_in)
    # Stored as (fan_in, fan_out) so the kernel does x @ W (== x @ W_torch.T).
    w = jax.random.uniform(kw, (fan_in, fan_out), jnp.float32, -bound, bound)
    b = jax.random.uniform(kb, (fan_out,), jnp.float32, -bound, bound)
    return w, b


if __name__ == "__main__":
    # Small shapes consistent with the module: MNIST-like but shrunk.
    B, C, Him, Wim = 2, 1, 16, 16
    input_shape = C * Him * Wim      # 256
    hidden_layers = 32
    output_shape = 10

    key = jax.random.PRNGKey(0)
    kx, k1, k2 = jax.random.split(key, 3)

    x = jax.random.normal(kx, (B, C, Him, Wim), jnp.float32)
    w1, b1 = init_linear_params(k1, input_shape, hidden_layers)
    w2, b2 = init_linear_params(k2, hidden_layers, output_shape)

    forward = make_mnist_forward(w1, b1, w2, b2)
    out = forward(x)
    jax.block_until_ready(out)
    assert out.shape == (B, output_shape)

    # Reference with the same bf16-operand / f32-accumulation precision policy
    # (output additionally rounded to bf16 inside the kernel).
    xb = x.reshape(B, -1).astype(jnp.bfloat16)
    h_ref = jnp.maximum(
        jnp.dot(xb, w1.astype(jnp.bfloat16), preferred_element_type=jnp.float32) + b1,
        0.0)
    ref = jnp.dot(h_ref.astype(jnp.bfloat16), w2.astype(jnp.bfloat16),
                  preferred_element_type=jnp.float32) + b2
    assert jnp.allclose(out.astype(jnp.float32), ref, atol=2e-2, rtol=2e-2)

    # Loose sanity check against the full-f32 PyTorch-equivalent forward.
    ref_f32 = jnp.maximum(x.reshape(B, -1) @ w1 + b1, 0.0) @ w2 + b2
    assert jnp.allclose(out.astype(jnp.float32), ref_f32, atol=5e-2, rtol=5e-2)

    print("KERNEL_OK")
</pallas_src>

<mosaic_0001>
module attributes {stable_mosaic.version = 11 : i64} {
  func.func @mlp_kernel(%arg0: i32, %arg1: memref<2x256xf32, #tpu.memory_space<vmem>>, %arg2: memref<256x128xbf16, #tpu.memory_space<vmem>>, %arg3: memref<1x128xf32, #tpu.memory_space<vmem>>, %arg4: memref<128x128xbf16, #tpu.memory_space<vmem>>, %arg5: memref<1x128xf32, #tpu.memory_space<vmem>>, %arg6: memref<2x128xbf16, #tpu.memory_space<vmem>>) attributes {dimension_semantics = [#tpu.dimension_semantics<parallel>], iteration_bounds = array<i64: 1>, scalar_prefetch = 0 : i64, scratch_operands = 0 : i64, tpu.core_type = #tpu.core_type<tc>, window_params = [{transform_indices = @transform_0, window_bounds = array<i64: 2, 256>}, {pipeline_mode = #tpu.pipeline_mode<synchronous>, transform_indices = @transform_1, window_bounds = array<i64: 256, 128>}, {pipeline_mode = #tpu.pipeline_mode<synchronous>, transform_indices = @transform_2, window_bounds = array<i64: 1, 128>}, {pipeline_mode = #tpu.pipeline_mode<synchronous>, transform_indices = @transform_3, window_bounds = array<i64: 128, 128>}, {pipeline_mode = #tpu.pipeline_mode<synchronous>, transform_indices = @transform_4, window_bounds = array<i64: 1, 128>}, {transform_indices = @transform_5, window_bounds = array<i64: 2, 128>}]} {
    %c0 = arith.constant 0 : index
    %c0_0 = arith.constant 0 : index
    %0 = vector.load %arg1[%c0, %c0_0] : memref<2x256xf32, #tpu.memory_space<vmem>>, vector<2x256xf32>
    %1 = arith.truncf %0 : vector<2x256xf32> to vector<2x256xbf16>
    %c0_1 = arith.constant 0 : index
    %c0_2 = arith.constant 0 : index
    %2 = vector.load %arg2[%c0_1, %c0_2] : memref<256x128xbf16, #tpu.memory_space<vmem>>, vector<256x128xbf16>
    %cst = arith.constant dense<0.000000e+00> : vector<2x128xf32>
    %3 = tpu.matmul %1, %2, %cst {dimension_numbers = #tpu.dot_dimension_numbers<[1], [0], [0], [1], [0, 0, 1, 1], [], []>} : vector<2x256xbf16>, vector<256x128xbf16>, vector<2x128xf32> -> vector<2x128xf32>
    %c0_3 = arith.constant 0 : index
    %c0_4 = arith.constant 0 : index
    %4 = vector.load %arg3[%c0_3, %c0_4] : memref<1x128xf32, #tpu.memory_space<vmem>>, vector<1x128xf32>
    %5 = vector.broadcast %4 : vector<1x128xf32> to vector<2x128xf32>
    %6 = arith.addf %3, %5 : vector<2x128xf32>
    %cst_5 = arith.constant 0.000000e+00 : f32
    %7 = vector.broadcast %cst_5 : f32 to vector<2x128xf32>
    %8 = arith.maximumf %6, %7 : vector<2x128xf32>
    %9 = arith.truncf %8 : vector<2x128xf32> to vector<2x128xbf16>
    %c0_6 = arith.constant 0 : index
    %c0_7 = arith.constant 0 : index
    %10 = vector.load %arg4[%c0_6, %c0_7] : memref<128x128xbf16, #tpu.memory_space<vmem>>, vector<128x128xbf16>
    %cst_8 = arith.constant dense<0.000000e+00> : vector<2x128xf32>
    %11 = tpu.matmul %9, %10, %cst_8 {dimension_numbers = #tpu.dot_dimension_numbers<[1], [0], [0], [1], [0, 0, 1, 1], [], []>} : vector<2x128xbf16>, vector<128x128xbf16>, vector<2x128xf32> -> vector<2x128xf32>
    %c0_9 = arith.constant 0 : index
    %c0_10 = arith.constant 0 : index
    %12 = vector.load %arg5[%c0_9, %c0_10] : memref<1x128xf32, #tpu.memory_space<vmem>>, vector<1x128xf32>
    %13 = vector.broadcast %12 : vector<1x128xf32> to vector<2x128xf32>
    %14 = arith.addf %11, %13 : vector<2x128xf32>
    %15 = arith.truncf %14 : vector<2x128xf32> to vector<2x128xbf16>
    %c0_11 = arith.constant 0 : index
    %c0_12 = arith.constant 0 : index
    %16 = vector.load %arg6[%c0_11, %c0_12] : memref<2x128xbf16, #tpu.memory_space<vmem>>, vector<2x128xbf16>
    tpu.vector_store %arg6[%c0_11, %c0_12], %15 {strides = array<i32>} : memref<2x128xbf16, #tpu.memory_space<vmem>>, vector<2x128xbf16>,
    return
  }
  func.func @transform_0(%arg0: i32) -> (i32, i32) {
    %c0_i32 = arith.constant 0 : i32
    %c0_i32_0 = arith.constant 0 : i32
    return %arg0, %c0_i32 : i32, i32
  }
  func.func @transform_1(%arg0: i32) -> (i32, i32) {
    %c0_i32 = arith.constant 0 : i32
    %c0_i32_0 = arith.constant 0 : i32
    %c0_i32_1 = arith.constant 0 : i32
    return %c0_i32, %c0_i32_0 : i32, i32
  }
  func.func @transform_2(%arg0: i32) -> (i32, i32) {
    %c0_i32 = arith.constant 0 : i32
    %c0_i32_0 = arith.constant 0 : i32
    %c0_i32_1 = arith.constant 0 : i32
    return %c0_i32, %c0_i32_0 : i32, i32
  }
  func.func @transform_3(%arg0: i32) -> (i32, i32) {
    %c0_i32 = arith.constant 0 : i32
    %c0_i32_0 = arith.constant 0 : i32
    %c0_i32_1 = arith.constant 0 : i32
    return %c0_i32, %c0_i32_0 : i32, i32
  }
  func.func @transform_4(%arg0: i32) -> (i32, i32) {
    %c0_i32 = arith.constant 0 : i32
    %c0_i32_0 = arith.constant 0 : i32
    %c0_i32_1 = arith.constant 0 : i32
    return %c0_i32, %c0_i32_0 : i32, i32
  }
  func.func @transform_5(%arg0: i32) -> (i32, i32) {
    %c0_i32 = arith.constant 0 : i32
    %c0_i32_0 = arith.constant 0 : i32
    return %arg0, %c0_i32 : i32, i32
  }
}

</mosaic_0001>

<llo_original>
// kernel: forward.1
$region0: #{forward.1}
  #allocation0 [shape = 'u32[]', space=smem, size = 0x4, offset = 0x4, fixed_abs, tag = 'smem constant byte address 0x4 - core index']
  #allocation1 [shape = 'u32[72,128]{1,0:T(1,128)}', space=vmem, size = 0x9000, scoped, tag = 'internal scratch']
  %s0 = inlined_call_operand.vmem [shape: f32[2,256], index: 0, kind: input, shape index: {}]
  %s1 = inlined_call_operand.hbm [shape: bf16[256,128], index: 1, kind: input, shape index: {}]
  %s2 = inlined_call_operand.vmem [shape: f32[1,128], index: 2, kind: input, shape index: {}]
  %s3 = inlined_call_operand.hbm [shape: bf16[128,128], index: 3, kind: input, shape index: {}]
  %s4 = inlined_call_operand.vmem [shape: f32[1,128], index: 4, kind: input, shape index: {}]
  %s5 = inlined_call_operand.hbm [shape: bf16[2,128], index: 5, kind: output, shape index: {}]
  %s6 = sld [smem:[#allocation0]]
  $region38: #{forward.1} parent=0
    _
  %s8 = ssub.s32 1, %s6
  %s9 = scalar_select 0, %s8, %s6
  $region1: #{forward.1} parent=0
    #allocation2 [shape = 'u8[65536]{0}', space=vmem, size = 0x10000, scoped, tag = 'input window, operand 1, single buffered']
    #allocation3 [shape = 's32[1]{0}', space=sflag, size = 0x4, scoped, tag = 'scoped memory for forward.1']
    #allocation4 [shape = 's32[1]{0}', space=sflag, size = 0x4, scoped, tag = 'scoped memory for forward.1']
    #allocation5 [shape = 'u8[32768]{0}', space=vmem, size = 0x8000, scoped, tag = 'input window, operand 3, single buffered']
    #allocation6 [shape = 's32[1]{0}', space=sflag, size = 0x4, scoped, tag = 'scoped memory for forward.1']
    #allocation7 [shape = 'u8[512]{0}', space=vmem, size = 0x400, scoped, tag = 'output window, operand 0, single buffered']
    %10 = vsyncpa [#allocation3], 0
    %11 = vsyncpa [#allocation6], 0
    %12 = vsyncpa [#allocation4], 0
    // Predicated region
    $region2: #{forward.1} parent=1 // pred_check
      _
    $region3: #{forward.1} parent=1 // pred_check_branch
      %14 = sbr.rel (0) target = $region5
    $region4: #{forward.1} parent=1 // pred_region
      _
    $region5: #{forward.1} parent=1 // pred_fallthru
      _
    // Predicated region
    $region6: #{forward.1} parent=1 // pred_check
      _
    $region7: #{forward.1} parent=1 // pred_check_branch
      %16 = sbr.rel (0) target = $region9
    $region8: #{forward.1} parent=1 // pred_region
      %18 = vsyncadd [#allocation3], 0
      %s19 = sshll.u32 %s1, 4
      %s20 = int_to_ptr.hbm [resolvable:$true] %s19
      %s21 = sshll.u32 [#allocation2], 4
      %s22 = int_to_ptr.vmem [resolvable:$true] %s21
      %27 = dma.hbm_to_vmem [thread:$0]  %s20, 2048, %s22, [#allocation3], 64, 64, 4
    $region9: #{forward.1} parent=1 // pred_fallthru
      _
    // Predicated region
    $region10: #{forward.1} parent=1 // pred_check
      _
    $region11: #{forward.1} parent=1 // pred_check_branch
      %29 = sbr.rel (0) target = $region13
    $region12: #{forward.1} parent=1 // pred_region
      _
    $region13: #{forward.1} parent=1 // pred_fallthru
      _
    // Predicated region
    $region14: #{forward.1} parent=1 // pred_check
      _
    $region15: #{forward.1} parent=1 // pred_check_branch
      %31 = sbr.rel (0) target = $region17
    $region16: #{forward.1} parent=1 // pred_region
      %33 = vsyncadd [#allocation6], 0
      %s34 = sshll.u32 %s3, 4
      %s35 = int_to_ptr.hbm [resolvable:$true] %s34
      %s36 = sshll.u32 [#allocation5], 4
      %s37 = int_to_ptr.vmem [resolvable:$true] %s36
      %42 = dma.hbm_to_vmem [thread:$0]  %s35, 1024, %s37, [#allocation6], 64, 64, 4
    $region17: #{forward.1} parent=1 // pred_fallthru
      _
    // Predicated region
    $region18: #{forward.1} parent=1 // pred_check
      _
    $region19: #{forward.1} parent=1 // pred_check_branch
      %44 = sbr.rel (0) target = $region21
    $region20: #{forward.1} parent=1 // pred_region
      _
    $region21: #{forward.1} parent=1 // pred_fallthru
      _
    // Predicated region
    $region22: #{forward.1} parent=1 // pred_check
      _
    $region23: #{forward.1} parent=1 // pred_check_branch
      %46 = sbr.rel (0) target = $region25
    $region24: #{forward.1} parent=1 // pred_region
      %48 = dma.done [#allocation3], 2048
    $region25: #{forward.1} parent=1 // pred_fallthru
      _
    // Predicated region
    $region26: #{forward.1} parent=1 // pred_check
      _
    $region27: #{forward.1} parent=1 // pred_check_branch
      %50 = sbr.rel (0) target = $region29
    $region28: #{forward.1} parent=1 // pred_region
      %52 = dma.done [#allocation6], 1024
    $region29: #{forward.1} parent=1 // pred_fallthru
      _
    %v53 = vld [vmem:[%s0] sm:$0xf]
    %55 = vst [vmem:[#allocation1] ss:$4 sm:$0xff] %v53
    %v56 = vld.sshfl [vmem:[#allocation1] sm:$0xff pattern:$0x73625140]
    %v57 = vld.sshfl [vmem:[#allocation1 + $0x8] sm:$0xff pattern:$0x73625140]
    %v60 = vpack.c.bf16 %v56, %v56
    %v61 = vpack.c.bf16 %v57, %v57
    %v62 = vld [vmem:[#allocation2] sm:$0xf]
    %v63 = vld [vmem:[#allocation2 + $0x4] sm:$0xf]
    %v64 = vld [vmem:[#allocation2 + $0x8] sm:$0xf]
    %v65 = vld [vmem:[#allocation2 + $0xc] sm:$0xf]
    %v66 = vld [vmem:[#allocation2 + $0x10] sm:$0xf]
    %v67 = vld [vmem:[#allocation2 + $0x14] sm:$0xf]
    %v68 = vld [vmem:[#allocation2 + $0x18] sm:$0xf]
    %v69 = vld [vmem:[#allocation2 + $0x1c] sm:$0xf]
    %v70 = vld [vmem:[#allocation2 + $0x20] sm:$0xf]
    %v71 = vld [vmem:[#allocation2 + $0x24] sm:$0xf]
    %v72 = vld [vmem:[#allocation2 + $0x28] sm:$0xf]
    %v73 = vld [vmem:[#allocation2 + $0x2c] sm:$0xf]
    %v74 = vld [vmem:[#allocation2 + $0x30] sm:$0xf]
    %v75 = vld [vmem:[#allocation2 + $0x34] sm:$0xf]
    %v76 = vld [vmem:[#allocation2 + $0x38] sm:$0xf]
    %v77 = vld [vmem:[#allocation2 + $0x3c] sm:$0xf]
    %v78 = vld [vmem:[#allocation2 + $0x40] sm:$0xf]
    %v79 = vld [vmem:[#allocation2 + $0x44] sm:$0xf]
    %v80 = vld [vmem:[#allocation2 + $0x48] sm:$0xf]
    %v81 = vld [vmem:[#allocation2 + $0x4c] sm:$0xf]
    %v82 = vld [vmem:[#allocation2 + $0x50] sm:$0xf]
    %v83 = vld [vmem:[#allocation2 + $0x54] sm:$0xf]
    %v84 = vld [vmem:[#allocation2 + $0x58] sm:$0xf]
    %v85 = vld [vmem:[#allocation2 + $0x5c] sm:$0xf]
    %v86 = vld [vmem:[#allocation2 + $0x60] sm:$0xf]
    %v87 = vld [vmem:[#allocation2 + $0x64] sm:$0xf]
    %v88 = vld [vmem:[#allocation2 + $0x68] sm:$0xf]
    %v89 = vld [vmem:[#allocation2 + $0x6c] sm:$0xf]
    %v90 = vld [vmem:[#allocation2 + $0x70] sm:$0xf]
    %v91 = vld [vmem:[#allocation2 + $0x74] sm:$0xf]
    %v92 = vld [vmem:[#allocation2 + $0x78] sm:$0xf]
    %v93 = vld [vmem:[#allocation2 + $0x7c] sm:$0xf]
    %v94 = vld [vmem:[%s2] sm:$0x1]
    %v96 = vperm.slane %v94, 0
    %v130 = vunpack.c.l.b16 %v62
    %v131 = vunpack.c.l.b16 %v63
    %v132 = vunpack.c.l.b16 %v64
    %v133 = vunpack.c.l.b16 %v65
    %v134 = vunpack.c.l.b16 %v66
    %v135 = vunpack.c.l.b16 %v67
    %v136 = vunpack.c.l.b16 %v68
    %v137 = vunpack.c.l.b16 %v69
    %v138 = vunpack.c.l.b16 %v70
    %v139 = vunpack.c.l.b16 %v71
    %v140 = vunpack.c.l.b16 %v72
    %v141 = vunpack.c.l.b16 %v73
    %v142 = vunpack.c.l.b16 %v74
    %v143 = vunpack.c.l.b16 %v75
    %v144 = vunpack.c.l.b16 %v76
    %v145 = vunpack.c.l.b16 %v77
    %v146 = vunpack.c.l.b16 %v78
    %v147 = vunpack.c.l.b16 %v79
    %v148 = vunpack.c.l.b16 %v80
    %v149 = vunpack.c.l.b16 %v81
    %v150 = vunpack.c.l.b16 %v82
    %v151 = vunpack.c.l.b16 %v83
    %v152 = vunpack.c.l.b16 %v84
    %v153 = vunpack.c.l.b16 %v85
    %v154 = vunpack.c.l.b16 %v86
    %v155 = vunpack.c.l.b16 %v87
    %v156 = vunpack.c.l.b16 %v88
    %v157 = vunpack.c.l.b16 %v89
    %v158 = vunpack.c.l.b16 %v90
    %v159 = vunpack.c.l.b16 %v91
    %v160 = vunpack.c.l.b16 %v92
    %v161 = vunpack.c.l.b16 %v93
    %v162 = vpack.c.b16 %v131, %v130
    %v163 = vpack.c.b16 %v133, %v132
    %v164 = vpack.c.b16 %v135, %v134
    %v165 = vpack.c.b16 %v137, %v136
    %v166 = vpack.c.b16 %v139, %v138
    %v167 = vpack.c.b16 %v141, %v140
    %v168 = vpack.c.b16 %v143, %v142
    %v169 = vpack.c.b16 %v145, %v144
    %v170 = vpack.c.b16 %v147, %v146
    %v171 = vpack.c.b16 %v149, %v148
    %v172 = vpack.c.b16 %v151, %v150
    %v173 = vpack.c.b16 %v153, %v152
    %v174 = vpack.c.b16 %v155, %v154
    %v175 = vpack.c.b16 %v157, %v156
    %v176 = vpack.c.b16 %v159, %v158
    %v177 = vpack.c.b16 %v161, %v160
    %194 = vmatpush.bf16.msra.mxu0 %v169
    %195 = vmatpush.bf16.msra.mxu0 %v168
    %196 = vmatpush.bf16.msra.mxu0 %v167
    %197 = vmatpush.bf16.msra.mxu0 %v166
    %198 = vmatpush.bf16.msra.mxu0 %v165
    %199 = vmatpush.bf16.msra.mxu0 %v164
    %200 = vmatpush.bf16.msra.mxu0 %v163
    %201 = vmatpush.bf16.msra.mxu0 %v162
    %202 = vmatmul.bf16.gmra.mxu0 %v60
    %v203 = vpop.f32.mrf.mxu0
    %v204 = vadd.f32 %v96, %v203
    %v205 = vpop.f32.mrf.mxu0
    %206 = vdwg.mxu0
    %207 = vmatpush.bf16.msra.mxu0 %v177
    %208 = vmatpush.bf16.msra.mxu0 %v176
    %209 = vmatpush.bf16.msra.mxu0 %v175
    %210 = vmatpush.bf16.msra.mxu0 %v174
    %211 = vmatpush.bf16.msra.mxu0 %v173
    %212 = vmatpush.bf16.msra.mxu0 %v172
    %213 = vmatpush.bf16.msra.mxu0 %v171
    %214 = vmatpush.bf16.msra.mxu0 %v170
    %215 = vmatmul.bf16.gmra.mxu0 %v61
    %v216 = vpop.f32.mrf.mxu0
    %v217 = vadd.f32 %v204, %v216
    %v218 = vpop.f32.mrf.mxu0
    %219 = vdwg.mxu0
    %v220 = vmax.f32 %v217, 0.0
    %v221 = vpack.c.bf16 %v220, %v220
    %v222 = vld [vmem:[#allocation5] sm:$0xf]
    %v223 = vld [vmem:[#allocation5 + $0x4] sm:$0xf]
    %v224 = vld [vmem:[#allocation5 + $0x8] sm:$0xf]
    %v225 = vld [vmem:[#allocation5 + $0xc] sm:$0xf]
    %v226 = vld [vmem:[#allocation5 + $0x10] sm:$0xf]
    %v227 = vld [vmem:[#allocation5 + $0x14] sm:$0xf]
    %v228 = vld [vmem:[#allocation5 + $0x18] sm:$0xf]
    %v229 = vld [vmem:[#allocation5 + $0x1c] sm:$0xf]
    %v230 = vld [vmem:[#allocation5 + $0x20] sm:$0xf]
    %v231 = vld [vmem:[#allocation5 + $0x24] sm:$0xf]
    %v232 = vld [vmem:[#allocation5 + $0x28] sm:$0xf]
    %v233 = vld [vmem:[#allocation5 + $0x2c] sm:$0xf]
    %v234 = vld [vmem:[#allocation5 + $0x30] sm:$0xf]
    %v235 = vld [vmem:[#allocation5 + $0x34] sm:$0xf]
    %v236 = vld [vmem:[#allocation5 + $0x38] sm:$0xf]
    %v237 = vld [vmem:[#allocation5 + $0x3c] sm:$0xf]
    %v238 = vld [vmem:[%s4] sm:$0x1]
    %v240 = vperm.slane %v238, 0
    %v258 = vunpack.c.l.b16 %v222
    %v259 = vunpack.c.l.b16 %v223
    %v260 = vunpack.c.l.b16 %v224
    %v261 = vunpack.c.l.b16 %v225
    %v262 = vunpack.c.l.b16 %v226
    %v263 = vunpack.c.l.b16 %v227
    %v264 = vunpack.c.l.b16 %v228
    %v265 = vunpack.c.l.b16 %v229
    %v266 = vunpack.c.l.b16 %v230
    %v267 = vunpack.c.l.b16 %v231
    %v268 = vunpack.c.l.b16 %v232
    %v269 = vunpack.c.l.b16 %v233
    %v270 = vunpack.c.l.b16 %v234
    %v271 = vunpack.c.l.b16 %v235
    %v272 = vunpack.c.l.b16 %v236
    %v273 = vunpack.c.l.b16 %v237
    %v274 = vpack.c.b16 %v259, %v258
    %v275 = vpack.c.b16 %v261, %v260
    %v276 = vpack.c.b16 %v263, %v262
    %v277 = vpack.c.b16 %v265, %v264
    %v278 = vpack.c.b16 %v267, %v266
    %v279 = vpack.c.b16 %v269, %v268
    %v280 = vpack.c.b16 %v271, %v270
    %v281 = vpack.c.b16 %v273, %v272
    %290 = vmatpush.bf16.msra.mxu0 %v281
    %291 = vmatpush.bf16.msra.mxu0 %v280
    %292 = vmatpush.bf16.msra.mxu0 %v279
    %293 = vmatpush.bf16.msra.mxu0 %v278
    %294 = vmatpush.bf16.msra.mxu0 %v277
    %295 = vmatpush.bf16.msra.mxu0 %v276
    %296 = vmatpush.bf16.msra.mxu0 %v275
    %297 = vmatpush.bf16.msra.mxu0 %v274
    %298 = vmatmul.bf16.gmra.mxu0 %v221
    %v299 = vpop.f32.mrf.mxu0
    %v300 = vadd.f32 %v240, %v299
    %v301 = vpop.f32.mrf.mxu0
    %302 = vdwg.mxu0
    %v303 = vpack.c.bf16 %v300, %v300
    %304 = vst [vmem:[#allocation7] sm:$0x1] %v303
    // Predicated region
    $region30: #{forward.1} parent=1 // pred_check
      _
    $region31: #{forward.1} parent=1 // pred_check_branch
      %306 = sbr.rel (0) target = $region33
    $region32: #{forward.1} parent=1 // pred_region
      %308 = vsyncadd [#allocation4], 0
      %s310 = sshll.u32 [#allocation7], 4
      %s311 = int_to_ptr.vmem [resolvable:$true] %s310
      %s312 = sshll.u32 %s5, 4
      %s313 = int_to_ptr.hbm [resolvable:$true] %s312
      %315 = dma.vmem_to_hbm [thread:$0]  %s311, 16, %s313, [#allocation4]
    $region33: #{forward.1} parent=1 // pred_fallthru
      _
    // Predicated region
    $region34: #{forward.1} parent=1 // pred_check
      _
    $region35: #{forward.1} parent=1 // pred_check_branch
      %317 = sbr.rel (0) target = $region37
    $region36: #{forward.1} parent=1 // pred_region
      %319 = dma.done [#allocation4], 16
    $region37: #{forward.1} parent=1 // pred_fallthru
      _
    %320 = vsyncpa [#allocation3], 1
    %321 = vsyncpa [#allocation6], 1
    %322 = vsyncpa [#allocation4], 1

</llo_original>
